<compile_context>
chip_gen: v6e
topology: v6e:2x2x1
jax: 0.10.0
libtpu: 0.0.40
codegen_flags: <defaults>
</compile_context>

<pallas_src>
import functools
import math

import jax
import jax.numpy as jnp
from jax import lax
from jax.experimental import pallas as pl
from jax.experimental.pallas import tpu as pltpu


def _round_up(v: int, m: int) -> int:
    return ((v + m - 1) // m) * m


def _detect_chip() -> str:
    try:
        kind = jax.devices()[0].device_kind.lower()
    except Exception:  # pragma: no cover
        return "unknown"
    if "v5 lite" in kind or "v5lite" in kind or "v5e" in kind:
        return "v5e"
    if "v6" in kind:
        return "v6e"
    if "v7" in kind:
        return "v7x"
    return "unknown"


_CHIP = _detect_chip()

# Tile ceilings sized so 2*(x + W + out) tiles + the f32 accumulator stay well
# under the per-chip scoped-VMEM budget (BlockSpec double-buffers each input).
#   v5e: ~820 GB/s HBM -> tm=256 already roughly balanced; 128 MiB VMEM.
#   v6e: 918 TF/s bf16 / ~1.4 TB/s HBM -> needs a large M tile; 128 MiB VMEM.
#   v7x: 3.2 TB/s HBM but only 64 MiB VMEM per TensorCore -> modest tiles.
_CONFIG = {
    "v5e": dict(tm_max=256, tk_max=512, tn_max=512, vmem_bytes=32 << 20),
    "v6e": dict(tm_max=1024, tk_max=512, tn_max=1024, vmem_bytes=64 << 20),
    "v7x": dict(tm_max=512, tk_max=512, tn_max=1024, vmem_bytes=48 << 20),
    "unknown": dict(tm_max=512, tk_max=512, tn_max=512, vmem_bytes=32 << 20),
}[_CHIP]

# Below this many MACs the launch/pad overhead dominates -> plain XLA path.
_PALLAS_MIN_MACS = 1 << 20


def _choose_tile(dim: int, max_tile: int, align: int):
    """Pick (tile, padded_dim). Prefers a no-pad tile (full dim or divisor)."""
    if dim <= max_tile:
        return dim, dim                       # one full-dim block, no padding
    top = max((max_tile // align) * align, align)
    floor = max(align, (top // 4 // align) * align)
    cand = top
    while cand >= floor:
        if dim % cand == 0:
            return cand, dim                  # aligned divisor -> no padding
        cand -= align
    return top, _round_up(dim, top)           # rare: pad up to a tile multiple


def _linear_gelu_kernel(x_ref, w_ref, b_ref, o_ref, acc_ref):
    k = pl.program_id(2)

    @pl.when(k == 0)
    def _():
        acc_ref[...] = jnp.zeros_like(acc_ref)

    # MXU matmul with f32 accumulation (works for f32 or bf16 feeds).
    acc_ref[...] += jnp.dot(
        x_ref[...], w_ref[...], preferred_element_type=jnp.float32
    )

    # Bias + exact (erf) GELU epilogue, executed once per output tile,
    # off the hot K loop.
    @pl.when(k == pl.num_programs(2) - 1)
    def _():
        y = acc_ref[...] + b_ref[...].astype(jnp.float32)    # (tm,tn)+(1,tn)
        inv_sqrt2 = jnp.float32(1.0 / math.sqrt(2.0))
        o_ref[...] = (0.5 * y * (1.0 + lax.erf(y * inv_sqrt2))).astype(o_ref.dtype)


@functools.partial(jax.jit, static_argnames=("cast_to_bf16", "force_pallas"))
def simple_linear_block(x, weight_t, bias, *, cast_to_bf16=False, force_pallas=False):
    """Forward pass of SimpleLinearBlock: GELU(x @ weight_t + bias).

    Args:
      x:        (B, input_dim), float32 or bfloat16.
      weight_t: (input_dim, output_dim) = PyTorch nn.Linear weight, transposed.
      bias:     (output_dim,) or (1, output_dim).
      cast_to_bf16: cast f32 operands to bf16 before the MXU.  Accumulation
        stays f32, but operand rounding means results can differ from the
        exact-f32 PyTorch reference at ~bf16 precision.
      force_pallas: run the Pallas kernel even for tiny problems.
    Returns:
      (B, output_dim) in x's original dtype.
    """
    M, K = x.shape
    Kw, N = weight_t.shape
    assert Kw == K, "weight_t must be (input_dim, output_dim)"
    bias2d = bias.reshape(1, N)
    out_dtype = x.dtype

    if cast_to_bf16:
        x = x.astype(jnp.bfloat16)
        weight_t = weight_t.astype(jnp.bfloat16)

    # Small-problem fallback: fused XLA dot+erf beats pad + grid overhead here.
    if not force_pallas and (M * K * N) < _PALLAS_MIN_MACS:
        y = jnp.dot(x, weight_t, preferred_element_type=jnp.float32)
        y = y + bias2d.astype(jnp.float32)
        return (0.5 * y * (1.0 + lax.erf(y * (1.0 / math.sqrt(2.0))))).astype(out_dtype)

    in_bytes = x.dtype.itemsize
    # Native sublane tile: 8 for 4-byte, 16 for 2-byte, 32 for 1-byte feeds.
    sublane = {4: 8, 2: 16, 1: 32}.get(in_bytes, 8)

    tm, Mp = _choose_tile(M, _CONFIG["tm_max"], sublane)
    tk, Kp = _choose_tile(K, _CONFIG["tk_max"], 128)
    tn, Np = _choose_tile(N, _CONFIG["tn_max"], 128)

    # v7x has 2 TensorCores: make sure the "parallel" (i, j) grid has >= 2
    # programs when M allows it, otherwise half the chip idles.
    if _CHIP == "v7x" and (Mp // tm) * (Np // tn) == 1 and M >= 2 * sublane:
        tm = _round_up(-(-M // 2), sublane)
        Mp = _round_up(M, tm)

    # Zero-pad only when genuinely required (unaligned dims larger than the
    # tile ceiling).  Zero-padded K keeps the reduction exact; padded M/N
    # rows/cols are sliced off at the end.
    xp = x if (Mp == M and Kp == K) else jnp.pad(x, ((0, Mp - M), (0, Kp - K)))
    wp = weight_t if (Kp == K and Np == N) else jnp.pad(weight_t, ((0, Kp - K), (0, Np - N)))
    bp = bias2d if Np == N else jnp.pad(bias2d, ((0, 0), (0, Np - N)))

    ni, nj, nk = Mp // tm, Np // tn, Kp // tk
    grid = (ni, nj, nk)

    # Advisory traffic model with re-read factors: x re-read per j tile (unless
    # K is a single resident block), W re-read per i tile (unless both j and k
    # collapse, in which case its block index is constant -> fetched once).
    x_fetch = Mp * Kp * (nj if nk > 1 else 1)
    w_fetch = Kp * Np * (1 if (nj == 1 and nk == 1) else ni)
    bytes_accessed = (
        in_bytes * x_fetch
        + weight_t.dtype.itemsize * w_fetch
        + bias2d.dtype.itemsize * Np * ni
        + jnp.dtype(out_dtype).itemsize * Mp * Np
    )

    out_padded = pl.pallas_call(
        _linear_gelu_kernel,
        out_shape=jax.ShapeDtypeStruct((Mp, Np), out_dtype),
        grid_spec=pltpu.PrefetchScalarGridSpec(
            num_scalar_prefetch=0,
            grid=grid,
            in_specs=[
                pl.BlockSpec((tm, tk), lambda i, j, k: (i, k)),
                # Note: on v5e a deeper weight pipeline (pl.Buffered(3)) can
                # hide DMA jitter when per-step compute is short.
                pl.BlockSpec((tk, tn), lambda i, j, k: (k, j)),
                pl.BlockSpec((1, tn), lambda i, j, k: (0, j)),
            ],
            out_specs=pl.BlockSpec((tm, tn), lambda i, j, k: (i, j)),
            scratch_shapes=[pltpu.VMEM((tm, tn), jnp.float32)],
        ),
        compiler_params=pltpu.CompilerParams(
            dimension_semantics=("parallel", "parallel", "arbitrary"),
            vmem_limit_bytes=_CONFIG["vmem_bytes"],
        ),
        cost_estimate=pl.CostEstimate(
            flops=2 * Mp * Kp * Np,
            transcendentals=Mp * Np,
            bytes_accessed=int(bytes_accessed),
        ),
    )(xp, wp, bp)

    if Mp == M and Np == N:
        return out_padded
    return out_padded[:M, :N]


def _reference(x, weight_t, bias):
    """Plain-JAX reference matching PyTorch nn.Linear + nn.GELU (exact/erf)."""
    y = jnp.dot(
        x.astype(jnp.float32), weight_t.astype(jnp.float32),
        precision=lax.Precision.HIGHEST,
    ) + bias.reshape(1, -1).astype(jnp.float32)
    return (0.5 * y * (1.0 + lax.erf(y / jnp.float32(math.sqrt(2.0))))).astype(x.dtype)


if __name__ == "__main__":
    # Deterministic inputs whose values are small multiples of 1/8: exactly
    # representable in bfloat16, so the f32-accumulated matmul is bit-exact
    # regardless of MXU pass count and we can compare at tight tolerance.
    def make_inputs(key, batch, in_dim, out_dim):
        kx, kw, kb = jax.random.split(key, 3)
        x = jax.random.randint(kx, (batch, in_dim), -4, 5).astype(jnp.float32) / 8.0
        w = jax.random.randint(kw, (in_dim, out_dim), -4, 5).astype(jnp.float32) / 8.0
        b = jax.random.randint(kb, (out_dim,), -4, 5).astype(jnp.float32) / 8.0
        return x, w, b

    k0, k1 = jax.random.split(jax.random.PRNGKey(0))

    # 1) Small shape typical for this module (input_dim=32 -> output_dim=64),
    #    forced through the Pallas kernel (single full-dim tile, no padding).
    x, w, b = make_inputs(k0, 8, 32, 64)
    out = jax.block_until_ready(simple_linear_block(x, w, b, force_pallas=True))
    ref = _reference(x, w, b)
    assert out.shape == (8, 64)
    assert jnp.allclose(out, ref, atol=1e-5, rtol=1e-5), "small-shape mismatch"

    # 2) Multi-tile shape through the default Pallas path.
    x2, w2, b2 = make_inputs(k1, 256, 384, 512)
    out2 = jax.block_until_ready(simple_linear_block(x2, w2, b2))
    ref2 = _reference(x2, w2, b2)
    assert out2.shape == (256, 512)
    assert jnp.allclose(out2, ref2, atol=1e-5, rtol=1e-5), "tiled-shape mismatch"

    # 3) Same shape with the bf16-feed option (exact here by construction).
    out3 = jax.block_until_ready(simple_linear_block(x2, w2, b2, cast_to_bf16=True))
    assert jnp.allclose(out3, ref2, atol=1e-5, rtol=1e-5), "bf16-feed mismatch"

    print("KERNEL_OK")
</pallas_src>

<mosaic_0001>
module attributes {stable_mosaic.version = 11 : i64} {
  func.func @_linear_gelu_kernel(%arg0: i32, %arg1: i32, %arg2: i32, %arg3: memref<8x32xf32, #tpu.memory_space<vmem>>, %arg4: memref<32x64xf32, #tpu.memory_space<vmem>>, %arg5: memref<1x64xf32, #tpu.memory_space<vmem>>, %arg6: memref<8x64xf32, #tpu.memory_space<vmem>>, %arg7: memref<8x64xf32, #tpu.memory_space<vmem>>) attributes {dimension_semantics = [#tpu.dimension_semantics<parallel>, #tpu.dimension_semantics<parallel>, #tpu.dimension_semantics<arbitrary>], iteration_bounds = array<i64: 1, 1, 1>, scalar_prefetch = 0 : i64, scratch_operands = 1 : i64, tpu.core_type = #tpu.core_type<tc>, window_params = [{transform_indices = @transform_0, window_bounds = array<i64: 8, 32>}, {transform_indices = @transform_1, window_bounds = array<i64: 32, 64>}, {transform_indices = @transform_2, window_bounds = array<i64: 1, 64>}, {transform_indices = @transform_3, window_bounds = array<i64: 8, 64>}]} {
    %c0_i32 = arith.constant 0 : i32
    %0 = arith.cmpi eq, %arg2, %c0_i32 : i32
    %1 = arith.extui %0 : i1 to i32
    %c0_i32_0 = arith.constant 0 : i32
    %2 = arith.cmpi ne, %1, %c0_i32_0 : i32
    scf.if %2 {
      %cst_10 = arith.constant 0.000000e+00 : f32
      %12 = vector.broadcast %cst_10 : f32 to vector<8x64xf32>
      %c0_11 = arith.constant 0 : index
      %c0_12 = arith.constant 0 : index
      %13 = vector.load %arg7[%c0_11, %c0_12] : memref<8x64xf32, #tpu.memory_space<vmem>>, vector<8x64xf32>
      tpu.vector_store %arg7[%c0_11, %c0_12], %12 {strides = array<i32>} : memref<8x64xf32, #tpu.memory_space<vmem>>, vector<8x64xf32>,
    } else {
    }
    %c0 = arith.constant 0 : index
    %c0_1 = arith.constant 0 : index
    %3 = vector.load %arg7[%c0, %c0_1] : memref<8x64xf32, #tpu.memory_space<vmem>>, vector<8x64xf32>
    %c0_2 = arith.constant 0 : index
    %c0_3 = arith.constant 0 : index
    %4 = vector.load %arg3[%c0_2, %c0_3] : memref<8x32xf32, #tpu.memory_space<vmem>>, vector<8x32xf32>
    %c0_4 = arith.constant 0 : index
    %c0_5 = arith.constant 0 : index
    %5 = vector.load %arg4[%c0_4, %c0_5] : memref<32x64xf32, #tpu.memory_space<vmem>>, vector<32x64xf32>
    %cst = arith.constant dense<0.000000e+00> : vector<8x64xf32>
    %6 = tpu.matmul %4, %5, %cst {dimension_numbers = #tpu.dot_dimension_numbers<[1], [0], [0], [1], [0, 0, 1, 1], [], []>} : vector<8x32xf32>, vector<32x64xf32>, vector<8x64xf32> -> vector<8x64xf32>
    %7 = arith.addf %3, %6 : vector<8x64xf32>
    %c0_6 = arith.constant 0 : index
    %c0_7 = arith.constant 0 : index
    %8 = vector.load %arg7[%c0_6, %c0_7] : memref<8x64xf32, #tpu.memory_space<vmem>>, vector<8x64xf32>
    tpu.vector_store %arg7[%c0_6, %c0_7], %7 {strides = array<i32>} : memref<8x64xf32, #tpu.memory_space<vmem>>, vector<8x64xf32>,
    %c0_i32_8 = arith.constant 0 : i32
    %9 = arith.cmpi eq, %arg2, %c0_i32_8 : i32
    %10 = arith.extui %9 : i1 to i32
    %c0_i32_9 = arith.constant 0 : i32
    %11 = arith.cmpi ne, %10, %c0_i32_9 : i32
    scf.if %11 {
      %c0_10 = arith.constant 0 : index
      %c0_11 = arith.constant 0 : index
      %12 = vector.load %arg7[%c0_10, %c0_11] : memref<8x64xf32, #tpu.memory_space<vmem>>, vector<8x64xf32>
      %c0_12 = arith.constant 0 : index
      %c0_13 = arith.constant 0 : index
      %13 = vector.load %arg5[%c0_12, %c0_13] : memref<1x64xf32, #tpu.memory_space<vmem>>, vector<1x64xf32>
      %14 = vector.broadcast %13 : vector<1x64xf32> to vector<8x64xf32>
      %15 = arith.addf %12, %14 : vector<8x64xf32>
      %cst_14 = arith.constant 5.000000e-01 : f32
      %16 = vector.broadcast %cst_14 : f32 to vector<8x64xf32>
      %17 = arith.mulf %16, %15 : vector<8x64xf32>
      %cst_15 = arith.constant 0.707106769 : f32
      %18 = vector.broadcast %cst_15 : f32 to vector<8x64xf32>
      %19 = arith.mulf %15, %18 : vector<8x64xf32>
      %20 = math.erf %19 : vector<8x64xf32>
      %cst_16 = arith.constant 1.000000e+00 : f32
      %21 = vector.broadcast %cst_16 : f32 to vector<8x64xf32>
      %22 = arith.addf %21, %20 : vector<8x64xf32>
      %23 = arith.mulf %17, %22 : vector<8x64xf32>
      %c0_17 = arith.constant 0 : index
      %c0_18 = arith.constant 0 : index
      %24 = vector.load %arg6[%c0_17, %c0_18] : memref<8x64xf32, #tpu.memory_space<vmem>>, vector<8x64xf32>
      tpu.vector_store %arg6[%c0_17, %c0_18], %23 {strides = array<i32>} : memref<8x64xf32, #tpu.memory_space<vmem>>, vector<8x64xf32>,
    } else {
    }
    return
  }
  func.func @transform_0(%arg0: i32, %arg1: i32, %arg2: i32) -> (i32, i32) {
    %c0_i32 = arith.constant 0 : i32
    return %arg0, %arg2 : i32, i32
  }
  func.func @transform_1(%arg0: i32, %arg1: i32, %arg2: i32) -> (i32, i32) {
    %c0_i32 = arith.constant 0 : i32
    return %arg2, %arg1 : i32, i32
  }
  func.func @transform_2(%arg0: i32, %arg1: i32, %arg2: i32) -> (i32, i32) {
    %c0_i32 = arith.constant 0 : i32
    %c0_i32_0 = arith.constant 0 : i32
    return %c0_i32, %arg1 : i32, i32
  }
  func.func @transform_3(%arg0: i32, %arg1: i32, %arg2: i32) -> (i32, i32) {
    %c0_i32 = arith.constant 0 : i32
    return %arg0, %arg1 : i32, i32
  }
}

</mosaic_0001>

<llo_original>
// kernel: simple_linear_block.1
$region0: #{simple_linear_block.1}
  #allocation0 [shape = 'u32[]', space=smem, size = 0x4, offset = 0x4, fixed_abs, tag = 'smem constant byte address 0x4 - core index']
  #allocation1 [shape = 'u32[144,128]{1,0:T(1,128)}', space=vmem, size = 0x12000, scoped, tag = 'internal scratch']
  #allocation2 [shape = 'f32[8,64]{1,0:T(8,128)}', space=vmem, size = 0x1000, scoped, tag = 'scratch operand']
  %s0 = inlined_call_operand.hbm [shape: f32[8,32], index: 0, kind: input, shape index: {}]
  %s1 = inlined_call_operand.hbm [shape: f32[32,64], index: 1, kind: input, shape index: {}]
  %s2 = inlined_call_operand.vmem [shape: f32[1,64], index: 2, kind: input, shape index: {}]
  %s3 = inlined_call_operand.hbm [shape: f32[8,64], index: 3, kind: output, shape index: {}]
  %s4 = sld [smem:[#allocation0]]
  $region38: #{simple_linear_block.1} parent=0
    _
  %s6 = ssub.s32 1, %s4
  %s7 = scalar_select 0, %s6, %s4
  $region1: #{simple_linear_block.1} parent=0
    #allocation3 [shape = 'u8[4096]{0}', space=vmem, size = 0x1000, scoped, tag = 'input window, operand 0, single buffered']
    #allocation4 [shape = 's32[1]{0}', space=sflag, size = 0x4, scoped, tag = 'scoped memory for simple_linear_block.1']
    #allocation5 [shape = 's32[1]{0}', space=sflag, size = 0x4, scoped, tag = 'scoped memory for simple_linear_block.1']
    #allocation6 [shape = 'u8[16384]{0}', space=vmem, size = 0x4000, scoped, tag = 'input window, operand 1, single buffered']
    #allocation7 [shape = 's32[1]{0}', space=sflag, size = 0x4, scoped, tag = 'scoped memory for simple_linear_block.1']
    #allocation8 [shape = 'u8[4096]{0}', space=vmem, size = 0x1000, scoped, tag = 'output window, operand 0, single buffered']
    %8 = vsyncpa [#allocation4], 0
    %9 = vsyncpa [#allocation7], 0
    %10 = vsyncpa [#allocation5], 0
    // Predicated region
    $region2: #{simple_linear_block.1} parent=1 // pred_check
      _
    $region3: #{simple_linear_block.1} parent=1 // pred_check_branch
      %12 = sbr.rel (0) target = $region5
    $region4: #{simple_linear_block.1} parent=1 // pred_region
      %s14 = ssub.s32 128, 128
      %15 = vsyncadd [#allocation4], %s14
      %s17 = sshll.u32 [#allocation3], 4
      %s18 = int_to_ptr.vmem [resolvable:$true] %s17
      %20 = dma.hbm_to_vmem [thread:$0]  %s0, 128, %s18, [#allocation4]
    $region5: #{simple_linear_block.1} parent=1 // pred_fallthru
      _
    // Predicated region
    $region6: #{simple_linear_block.1} parent=1 // pred_check
      _
    $region7: #{simple_linear_block.1} parent=1 // pred_check_branch
      %22 = sbr.rel (0) target = $region9
    $region8: #{simple_linear_block.1} parent=1 // pred_region
      %s24 = ssub.s32 512, 512
      %25 = vsyncadd [#allocation7], %s24
      %s26 = sshll.u32 [#allocation6], 4
      %s27 = int_to_ptr.vmem [resolvable:$true] %s26
      %32 = dma.hbm_to_vmem [thread:$0]  %s1, 512, %s27, [#allocation7], 128, 128, 8
    $region9: #{simple_linear_block.1} parent=1 // pred_fallthru
      _
    // Predicated region
    $region10: #{simple_linear_block.1} parent=1 // pred_check
      _
    $region11: #{simple_linear_block.1} parent=1 // pred_check_branch
      %34 = sbr.rel (0) target = $region13
    $region12: #{simple_linear_block.1} parent=1 // pred_region
      _
    $region13: #{simple_linear_block.1} parent=1 // pred_fallthru
      _
    // Predicated region
    $region14: #{simple_linear_block.1} parent=1 // pred_check
      _
    $region15: #{simple_linear_block.1} parent=1 // pred_check_branch
      %36 = sbr.rel (0) target = $region17
    $region16: #{simple_linear_block.1} parent=1 // pred_region
      %37 = dma.done [#allocation4], 128
    $region17: #{simple_linear_block.1} parent=1 // pred_fallthru
      _
    // Predicated region
    $region18: #{simple_linear_block.1} parent=1 // pred_check
      _
    $region19: #{simple_linear_block.1} parent=1 // pred_check_branch
      %39 = sbr.rel (0) target = $region21
    $region20: #{simple_linear_block.1} parent=1 // pred_region
      %40 = dma.done [#allocation7], 512
    $region21: #{simple_linear_block.1} parent=1 // pred_fallthru
      _
    %p41 = scmp.eq.s32.totalorder 0, 0
    // Predicated region
    $region22: #{simple_linear_block.1} parent=1 // pred_check
      %p42 = pneg %p41
    $region23: #{simple_linear_block.1} parent=1 // pred_check_branch
      %44 = sbr.rel (%p42) target = $region25
    $region24: #{simple_linear_block.1} parent=1 // pred_region
      %vm45 = vcmask 523264
      %46 = vst.msk [vmem:[#allocation2] sm:$0xff] %vm45, 0.0
    $region25: #{simple_linear_block.1} parent=1 // pred_fallthru
      _
    %v47 = vld [vmem:[#allocation2] sm:$0xff]
    %v48 = vld [vmem:[#allocation3] sm:$0xff]
    %v49 = vld [vmem:[#allocation6] sm:$0xff]
    %v50 = vld [vmem:[#allocation6 + $0x8] sm:$0xff]
    %v51 = vld [vmem:[#allocation6 + $0x10] sm:$0xff]
    %v52 = vld [vmem:[#allocation6 + $0x18] sm:$0xff]
    %vm53 = vcmask 261120
    %v55 = vsel %vm53, %v48, 0
    %57 = vmatprep.subr.mxu0 0.0
    %58 = vmatpush1.msra.mxu0 0.0
    %59 = vmatprep.subr.mxu0 0.0
    %60 = vmatpush1.msra.mxu0 0.0
    %61 = vmatprep.subr.mxu0 0.0
    %62 = vmatpush1.msra.mxu0 0.0
    %63 = vmatprep.subr.mxu0 0.0
    %64 = vmatpush1.msra.mxu0 0.0
    %65 = vmatprep.subr.mxu0 0.0
    %66 = vmatpush1.msra.mxu0 0.0
    %67 = vmatprep.subr.mxu0 0.0
    %68 = vmatpush1.msra.mxu0 0.0
    %69 = vmatprep.subr.mxu0 0.0
    %70 = vmatpush1.msra.mxu0 0.0
    %71 = vmatprep.subr.mxu0 0.0
    %72 = vmatpush1.msra.mxu0 0.0
    %73 = vmatprep.subr.mxu0 0.0
    %74 = vmatpush1.msra.mxu0 0.0
    %75 = vmatprep.subr.mxu0 0.0
    %76 = vmatpush1.msra.mxu0 0.0
    %77 = vmatprep.subr.mxu0 0.0
    %78 = vmatpush1.msra.mxu0 0.0
    %79 = vmatprep.subr.mxu0 0.0
    %80 = vmatpush1.msra.mxu0 0.0
    %81 = vmatprep.subr.mxu0 0.0
    %82 = vmatpush1.msra.mxu0 %v52
    %83 = vmatprep.subr.mxu0 0.0
    %84 = vmatpush1.msra.mxu0 %v51
    %85 = vmatprep.subr.mxu0 0.0
    %86 = vmatpush1.msra.mxu0 %v50
    %87 = vmatprep.subr.mxu0 0.0
    %88 = vmatpush1.msra.mxu0 %v49
    %89 = vmatprep.subr.mxu0 0.0
    %90 = vmatpush2.msra.mxu0 0.0
    %91 = vmatprep.subr.mxu0 0.0
    %92 = vmatpush2.msra.mxu0 0.0
    %93 = vmatprep.subr.mxu0 0.0
    %94 = vmatpush2.msra.mxu0 0.0
    %95 = vmatprep.subr.mxu0 0.0
    %96 = vmatpush2.msra.mxu0 0.0
    %97 = vmatprep.subr.mxu0 0.0
    %98 = vmatpush2.msra.mxu0 0.0
    %99 = vmatprep.subr.mxu0 0.0
    %100 = vmatpush2.msra.mxu0 0.0
    %101 = vmatprep.subr.mxu0 0.0
    %102 = vmatpush2.msra.mxu0 0.0
    %103 = vmatprep.subr.mxu0 0.0
    %104 = vmatpush2.msra.mxu0 0.0
    %105 = vmatprep.subr.mxu0 0.0
    %106 = vmatpush2.msra.mxu0 0.0
    %107 = vmatprep.subr.mxu0 0.0
    %108 = vmatpush2.msra.mxu0 0.0
    %109 = vmatprep.subr.mxu0 0.0
    %110 = vmatpush2.msra.mxu0 0.0
    %111 = vmatprep.subr.mxu0 0.0
    %112 = vmatpush2.msra.mxu0 0.0
    %113 = vmatprep.subr.mxu0 0.0
    %114 = vmatpush2.msra.mxu0 0.0
    %115 = vmatprep.subr.mxu0 0.0
    %116 = vmatpush2.msra.mxu0 0.0
    %117 = vmatprep.subr.mxu0 0.0
    %118 = vmatpush2.msra.mxu0 0.0
    %119 = vmatprep.subr.mxu0 0.0
    %120 = vmatpush2.msra.mxu0 0.0
    %121 = vmatprep.mubr.f32.mxu0 0.0
    %122 = vmatmul.mubr.f32.gmra.mxu0 %v55
    %v123 = vpop.f32.mrf.mxu0
    %v124 = vadd.f32 0.0, %v123
    %v125 = vpop.f32.mrf.mxu0
    %126 = vdwg.mxu0
    %v127 = vadd.f32 %v47, %v124
    %vm128 = vcmask 523264
    %129 = vst.msk [vmem:[#allocation2] sm:$0xff] %vm128, %v127
    // Predicated region
    $region26: #{simple_linear_block.1} parent=1 // pred_check
      %p130 = pneg %p41
    $region27: #{simple_linear_block.1} parent=1 // pred_check_branch
      %132 = sbr.rel (%p130) target = $region29
    $region28: #{simple_linear_block.1} parent=1 // pred_region
      %v133 = vld [vmem:[#allocation2] sm:$0xff]
      %v134 = vld [vmem:[%s2] sm:$0x1]
      %v136 = vlaneseq
      %v137 = vshrl.u32 %v136, 7
      %v138 = vsub.s32 0, %v137
      %v139 = vrot.slane %v134, %v138
      %v141 = vadd.f32 %v133, %v139
      %v142 = vmul.f32 %v141, 0.5
      %v143 = vmul.f32 %v141, 0.70710677
      %v144 = verf.f32.pop %v143
      %v145 = vadd.f32 %v144, 1.0
      %v146 = vmul.f32 %v142, %v145
      %147 = vst.msk [vmem:[#allocation8] sm:$0xff] %vm128, %v146
    $region29: #{simple_linear_block.1} parent=1 // pred_fallthru
      _
    // Predicated region
    $region30: #{simple_linear_block.1} parent=1 // pred_check
      _
    $region31: #{simple_linear_block.1} parent=1 // pred_check_branch
      %149 = sbr.rel (0) target = $region33
    $region32: #{simple_linear_block.1} parent=1 // pred_region
      %s151 = ssub.s32 128, 128
      %152 = vsyncadd [#allocation5], %s151
      %s154 = sshll.u32 [#allocation8], 4
      %s155 = int_to_ptr.vmem [resolvable:$true] %s154
      %157 = dma.vmem_to_hbm [thread:$0]  %s155, 128, %s3, [#allocation5]
    $region33: #{simple_linear_block.1} parent=1 // pred_fallthru
      _
    // Predicated region
    $region34: #{simple_linear_block.1} parent=1 // pred_check
      _
    $region35: #{simple_linear_block.1} parent=1 // pred_check_branch
      %159 = sbr.rel (0) target = $region37
    $region36: #{simple_linear_block.1} parent=1 // pred_region
      %160 = dma.done [#allocation5], 128
    $region37: #{simple_linear_block.1} parent=1 // pred_fallthru
      _
    %161 = vsyncpa [#allocation4], 1
    %162 = vsyncpa [#allocation7], 1
    %163 = vsyncpa [#allocation5], 1

</llo_original>
